<compile_context>
chip_gen: v7x
topology: tpu7x:2x2x1
jax: 0.10.0
libtpu: 0.0.40
codegen_flags: <defaults>
</compile_context>

<pallas_src>
import functools

import jax
import jax.numpy as jnp
from jax.experimental import pallas as pl
from jax.experimental.pallas import tpu as pltpu


# ----------------------------------------------------------------------------- kernels ----
def _matmul_stats_kernel(bt_ref, at_ref, yt_ref, st_ref):
    """Per M-tile: y^T_tile = B^T @ A^T_tile on the MXU (bf16 in, fp32 accumulate),
    lane-dense bf16 store of the pre-BN activations, plus per-tile partial per-channel
    BN statistics kept as 128-lane chunks (computed from the fp32 accumulator, so the
    bf16 storage of y does not touch BN numerics)."""
    y = jnp.dot(bt_ref[...], at_ref[...], preferred_element_type=jnp.float32)  # (Cp, tm) f32
    yt_ref[...] = y.astype(yt_ref.dtype)                                       # lane-dense bf16

    cp, tm = y.shape
    s1 = jnp.zeros((cp, 128), jnp.float32)
    s2 = jnp.zeros((cp, 128), jnp.float32)
    for j in range(tm // 128):                       # static, 128-aligned lane chunks
        blk = y[:, j * 128:(j + 1) * 128]
        s1 = s1 + blk
        s2 = s2 + blk * blk
    st_ref[:, 0:128] = s1                            # packed (Cp, 256) stats block:
    st_ref[:, 128:256] = s2                          # [sum | sum-of-squares]


def _bn_relu_kernel(yt_ref, scale_ref, shift_ref, o_ref):
    """Elementwise batch-norm (precomputed per-channel scale/shift columns) + ReLU on the
    lane-dense transposed activations (bf16 in, fp32 out)."""
    y = yt_ref[...].astype(jnp.float32)
    o_ref[...] = jnp.maximum(y * scale_ref[...] + shift_ref[...], 0.0)


# ------------------------------------------------------------------------------- glue ----
def _round_up(a, b):
    return ((a + b - 1) // b) * b


def _build_subpixel_operands_t(x, w_t, stride, compute_dtype):
    """Sub-pixel decomposition of ConvTranspose2d (+ stride-2 crop), transposed layout.

    y[n, co, s*a+r, s*b+c] = sum_{dh,dw,ci} x[n, ci, a-dh, b-dw] * w_t[ci, co, s*dh+r, s*dw+c]

    Returns
      A^T : (T*Cin, M)       rows (tap=(dh,dw), ci), cols (n, a, b), M = N*ohp*owp
      B^T : (s*s*Cout, T*Cin) rows (r, c, co), cols (tap, ci)
    so one matmul per M-tile produces every output phase; no dilation zeros are built or
    multiplied, and the big (Cp, M) result is lane-dense in the pixel dimension.
    """
    N, Cin, H, W = x.shape
    _, Cout, K, _ = w_t.shape
    s = stride
    dmax = -(-K // s)                       # taps per spatial dim
    T = dmax * dmax
    if s == 2:
        ohp, owp = H, W                     # per-phase grid == cropped y[:, :, :2H, :2W]
    else:
        ohp, owp = H + K - 1, W + K - 1
    pad_t, pad_b = dmax - 1, ohp - H
    pad_l, pad_r = dmax - 1, owp - W
    M = N * ohp * owp

    # A^T via slice+concat views of a single padded CNHW copy of x (no stack over a new
    # axis + big transpose of the T*|x| tensor).
    # TODO(synk): eliminate this A^T materialization entirely with a tap grid axis whose
    # index_map offsets into one padded copy of x (or lax.conv_general_dilated_patches);
    # kept explicit here for lowering robustness.
    xc = jnp.transpose(x.astype(compute_dtype), (1, 0, 2, 3))            # (Cin, N, H, W)
    x_pad = jnp.pad(xc, ((0, 0), (0, 0), (pad_t, pad_b), (pad_l, pad_r)))
    views = []
    for dh in range(dmax):
        for dw in range(dmax):
            oh0 = dmax - 1 - dh
            ow0 = dmax - 1 - dw
            v = x_pad[:, :, oh0:oh0 + ohp, ow0:ow0 + owp]                # (Cin, N, ohp, owp)
            views.append(v.reshape(Cin, M))
    At = jnp.concatenate(views, axis=0)                                  # (T*Cin, M)

    # B^T via pad + reshape + transpose (no chain of .at[].set updates).
    # TODO(synk): when weights are static across calls, precompute B^T once outside the
    # per-forward jit.
    wc = w_t.astype(compute_dtype)
    wp = jnp.pad(wc, ((0, 0), (0, 0), (0, s * dmax - K), (0, s * dmax - K)))
    B6 = wp.reshape(Cin, Cout, dmax, s, dmax, s)                         # (ci, co, dh, r, dw, c)
    Bt = B6.transpose(3, 5, 1, 2, 4, 0).reshape(s * s * Cout, T * Cin)   # ((r,c,co),(dh,dw,ci))
    return At, Bt, (ohp, owp)


def deconv2d_forward(x, w_t, gamma, beta, *, stride=2, eps=1e-5, tm=512,
                     compute_dtype=jnp.bfloat16):
    """Forward pass of Deconv2d(in_ch, out_ch, K, stride, relu=True, bn=True).

    x    : (N, Cin, H, W)     float32, NCHW
    w_t  : (Cin, Cout, K, K)  ConvTranspose2d weight (no bias, since bn=True)
    gamma/beta : (Cout,)      BatchNorm2d affine params (training-mode batch statistics)

    NOTE: matmul operands and the y intermediate are bf16 (fp32 MXU accumulation / fp32
    BN statistics); results differ from a fp32 PyTorch ConvTranspose2d at the bf16
    rounding level.  This is a documented precision choice.
    """
    assert stride in (1, 2)
    N, Cin, H, W = x.shape
    Cin_w, Cout, K, K2 = w_t.shape
    assert Cin == Cin_w and K == K2
    s = stride

    At, Bt, (ohp, owp) = _build_subpixel_operands_t(x, w_t, stride, compute_dtype)
    KKC, M = At.shape
    Cp = s * s * Cout

    # ---- M-tile selection ----
    # tm must be a multiple of 128 (lane width).  Shrink for small problems so the
    # parallel M axis has >= 4 grid steps (v7x: 2 TensorCores; >= 2 steps needed for any
    # pipelining).  For real sizes tm stays at the (large) default; on v6e/v5e with
    # 128 MiB VMEM it can be raised to 1024-2048, on v7x re-derive against 64 MiB per TC.
    assert tm % 128 == 0, "tm must be a multiple of 128"
    tm = min(tm, _round_up(M, 128))
    while tm > 128 and pl.cdiv(M, tm) < 4:
        tm -= 128
    Mp = _round_up(M, tm)
    n_tiles = Mp // tm
    if Mp != M:
        # Zero columns contribute 0 to the BN sums and are sliced off at the end,
        # so no in-kernel masking is needed.
        At = jnp.pad(At, ((0, 0), (0, Mp - M)))

    # ---- kernel 1: matmul + per-tile partial BN statistics (fully parallel grid) ----
    # NOTE: for real layers with large Cout / Cin, add grid axes tiling Cp (256-wide on
    # v6e/v7x, 128 on v5e, 'parallel') and KKC (128/256-aligned, LAST axis, 'arbitrary',
    # fp32 VMEM accumulator with pl.when init at k==0 and downcast/store + stats at
    # k==last) so the MXU tiles fill; at these demo sizes one block per step suffices.
    bt_kwargs = {}
    if Bt.size * jnp.dtype(Bt.dtype).itemsize >= (1 << 20):
        # Constant-index resident weight block: single-buffer it to free VMEM for larger
        # A / y tiles (matters most against v7x's 64 MiB per-TC VMEM).
        bt_kwargs["pipeline_mode"] = pl.Buffered(1)
    bt_spec = pl.BlockSpec((Cp, KKC), lambda i: (0, 0), **bt_kwargs)

    yt, stats = pl.pallas_call(
        _matmul_stats_kernel,
        out_shape=(jax.ShapeDtypeStruct((Cp, Mp), jnp.bfloat16),        # lane-dense bf16 y^T
                   jax.ShapeDtypeStruct((Cp, 256 * n_tiles), jnp.float32)),
        grid_spec=pltpu.PrefetchScalarGridSpec(
            num_scalar_prefetch=0,
            grid=(n_tiles,),
            in_specs=[bt_spec,
                      pl.BlockSpec((KKC, tm), lambda i: (0, i))],
            out_specs=[pl.BlockSpec((Cp, tm), lambda i: (0, i)),
                       pl.BlockSpec((Cp, 256), lambda i: (0, i))]),
        compiler_params=pltpu.CompilerParams(
            dimension_semantics=("parallel",),
            # 32 MiB is safe on every generation; raise toward 64-96 MiB on v6e/v5e
            # (128 MiB physical) for large tiles, keep <= ~48-56 MiB on v7x (64 MiB/TC).
            vmem_limit_bytes=32 * 1024 * 1024),
    )(Bt, At)

    # ---- fold BN statistics into per-channel scale/shift (batch statistics) ----
    st = stats.reshape(Cp, n_tiles, 2, 128)
    s1 = st[:, :, 0, :].sum(axis=(1, 2)).reshape(s * s, Cout).sum(axis=0)   # (Cout,)
    s2 = st[:, :, 1, :].sum(axis=(1, 2)).reshape(s * s, Cout).sum(axis=0)
    count = jnp.float32(N * ohp * owp * s * s)                               # = N * OH * OW
    mean = s1 / count
    # TODO(synk): E[y^2] - E[y]^2 can cancel for large-mean activations; switch to
    # mean-shifted / Welford-style per-tile partials if BN-stat accuracy becomes an issue.
    var = s2 / count - mean * mean                                           # biased, like torch
    scale = gamma.astype(jnp.float32) * jax.lax.rsqrt(var + eps)
    shift = beta.astype(jnp.float32) - mean * scale
    # TODO(synk): running-stat (momentum) updates of the BatchNorm buffers are a training
    # side effect and are not reproduced here.
    scale_col = jnp.tile(scale, s * s).reshape(Cp, 1)                        # (r,c,co) order
    shift_col = jnp.tile(shift, s * s).reshape(Cp, 1)

    # ---- kernel 2: lane-dense elementwise normalize + ReLU (bf16 in, fp32 out) ----
    out_t = pl.pallas_call(
        _bn_relu_kernel,
        out_shape=jax.ShapeDtypeStruct((Cp, Mp), jnp.float32),
        grid_spec=pltpu.PrefetchScalarGridSpec(
            num_scalar_prefetch=0,
            grid=(n_tiles,),
            in_specs=[pl.BlockSpec((Cp, tm), lambda i: (0, i)),
                      pl.BlockSpec((Cp, 1), lambda i: (0, 0)),
                      pl.BlockSpec((Cp, 1), lambda i: (0, 0))],
            out_specs=pl.BlockSpec((Cp, tm), lambda i: (0, i))),
        compiler_params=pltpu.CompilerParams(
            dimension_semantics=("parallel",),
            vmem_limit_bytes=32 * 1024 * 1024),
    )(yt, scale_col, shift_col)

    # ---- depth-to-space + NCHW assembly ----
    # TODO(synk): fold this permute into kernel 2 (grid over (N, row-tiles), NCHW output
    # block, in-kernel (rows,owp,s,s,Cout)->(Cout,s*rows,s*owp) permute on the idle XLU)
    # to save one read+write pass over the fp32 output; kept in the wrapper here because
    # arbitrary-rank in-kernel transposes are a Mosaic-lowering robustness risk.
    yv = out_t[:, :M]                                          # drop zero padding columns
    out = yv.reshape(s, s, Cout, N, ohp, owp)                  # (r, c, co, n, a, b)
    out = out.transpose(3, 2, 4, 0, 5, 1)                      # (n, co, a, r, b, c)
    return out.reshape(N, Cout, ohp * s, owp * s)


# ------------------------------------------------------------------- pure-JAX reference ----
def _reference_deconv2d(x, w_t, gamma, beta, *, stride, eps=1e-5):
    """Plain-JAX reference: ConvTranspose2d (+ stride-2 crop) + BN(batch stats) + ReLU."""
    K = w_t.shape[2]
    y = jax.lax.conv_general_dilated(
        x, w_t[:, :, ::-1, ::-1],
        window_strides=(1, 1),
        padding=((K - 1, K - 1), (K - 1, K - 1)),
        lhs_dilation=(stride, stride),
        dimension_numbers=("NCHW", "IOHW", "NCHW"),
        precision=jax.lax.Precision.HIGHEST)
    if stride == 2:
        H, W = x.shape[2], x.shape[3]
        y = y[:, :, :2 * H, :2 * W]
    mean = jnp.mean(y, axis=(0, 2, 3), keepdims=True)
    var = jnp.mean((y - mean) ** 2, axis=(0, 2, 3), keepdims=True)
    yn = (y - mean) * jax.lax.rsqrt(var + eps)
    yn = yn * gamma[None, :, None, None] + beta[None, :, None, None]
    return jnp.maximum(yn, 0.0)


if __name__ == "__main__":
    key = jax.random.PRNGKey(0)
    k_x, k_w, k_g, k_b = jax.random.split(key, 4)

    # Deconv2d(in_channels=4, out_channels=8, kernel_size=3, stride=2, relu=True, bn=True)
    N, Cin, H, W = 2, 4, 16, 16
    Cout, K, stride = 8, 3, 2

    x = jax.random.normal(k_x, (N, Cin, H, W), dtype=jnp.float32)
    w_t = jax.random.normal(k_w, (Cin, Cout, K, K), dtype=jnp.float32) * 0.1
    gamma = jax.random.uniform(k_g, (Cout,), dtype=jnp.float32, minval=0.5, maxval=1.5)
    beta = jax.random.normal(k_b, (Cout,), dtype=jnp.float32) * 0.1

    fwd = jax.jit(functools.partial(deconv2d_forward, stride=stride))
    out = fwd(x, w_t, gamma, beta)
    jax.block_until_ready(out)
    assert out.shape == (N, Cout, 2 * H, 2 * W), out.shape

    # Correctness check against a plain-JAX reference on the same bf16-rounded operands.
    # Tolerance accounts for the bf16 storage of the pre-BN intermediate (~2^-9 relative,
    # amplified by BN normalization to a few 1e-2 at the distribution tails).
    xr = x.astype(jnp.bfloat16).astype(jnp.float32)
    wr = w_t.astype(jnp.bfloat16).astype(jnp.float32)
    ref = _reference_deconv2d(xr, wr, gamma, beta, stride=stride)
    err = float(jnp.max(jnp.abs(out - ref)))
    assert err < 5e-2, f"max abs err vs reference: {err}"

    print("KERNEL_OK")
</pallas_src>

<mosaic_0001>
module attributes {stable_mosaic.version = 11 : i64} {
  func.func @_matmul_stats_kernel(%arg0: i32, %arg1: memref<32x16xbf16, #tpu.memory_space<vmem>>, %arg2: memref<16x128xbf16, #tpu.memory_space<vmem>>, %arg3: memref<32x128xbf16, #tpu.memory_space<vmem>>, %arg4: memref<32x256xf32, #tpu.memory_space<vmem>>) attributes {dimension_semantics = [#tpu.dimension_semantics<parallel>], iteration_bounds = array<i64: 4>, scalar_prefetch = 0 : i64, scratch_operands = 0 : i64, tpu.core_type = #tpu.core_type<tc>, window_params = [{pipeline_mode = #tpu.pipeline_mode<synchronous>, transform_indices = @transform_0, window_bounds = array<i64: 32, 16>}, {transform_indices = @transform_1, window_bounds = array<i64: 16, 128>}, {transform_indices = @transform_2, window_bounds = array<i64: 32, 128>}, {transform_indices = @transform_3, window_bounds = array<i64: 32, 256>}]} {
    %c0 = arith.constant 0 : index
    %c0_0 = arith.constant 0 : index
    %0 = vector.load %arg1[%c0, %c0_0] : memref<32x16xbf16, #tpu.memory_space<vmem>>, vector<32x16xbf16>
    %c0_1 = arith.constant 0 : index
    %c0_2 = arith.constant 0 : index
    %1 = vector.load %arg2[%c0_1, %c0_2] : memref<16x128xbf16, #tpu.memory_space<vmem>>, vector<16x128xbf16>
    %cst = arith.constant dense<0.000000e+00> : vector<32x128xf32>
    %2 = tpu.matmul %0, %1, %cst {dimension_numbers = #tpu.dot_dimension_numbers<[1], [0], [0], [1], [0, 0, 1, 1], [], []>} : vector<32x16xbf16>, vector<16x128xbf16>, vector<32x128xf32> -> vector<32x128xf32>
    %3 = arith.truncf %2 : vector<32x128xf32> to vector<32x128xbf16>
    %c0_3 = arith.constant 0 : index
    %c0_4 = arith.constant 0 : index
    %4 = vector.load %arg3[%c0_3, %c0_4] : memref<32x128xbf16, #tpu.memory_space<vmem>>, vector<32x128xbf16>
    tpu.vector_store %arg3[%c0_3, %c0_4], %3 {strides = array<i32>} : memref<32x128xbf16, #tpu.memory_space<vmem>>, vector<32x128xbf16>,
    %cst_5 = arith.constant 0.000000e+00 : f32
    %5 = vector.broadcast %cst_5 : f32 to vector<32x128xf32>
    %cst_6 = arith.constant 0.000000e+00 : f32
    %6 = vector.broadcast %cst_6 : f32 to vector<32x128xf32>
    %7 = arith.addf %5, %2 : vector<32x128xf32>
    %8 = arith.mulf %2, %2 : vector<32x128xf32>
    %9 = arith.addf %6, %8 : vector<32x128xf32>
    %c0_7 = arith.constant 0 : index
    %c0_8 = arith.constant 0 : index
    %10 = vector.load %arg4[%c0_7, %c0_8] : memref<32x256xf32, #tpu.memory_space<vmem>>, vector<32x128xf32>
    tpu.vector_store %arg4[%c0_7, %c0_8], %7 {strides = array<i32>} : memref<32x256xf32, #tpu.memory_space<vmem>>, vector<32x128xf32>,
    %c0_9 = arith.constant 0 : index
    %c128 = arith.constant 128 : index
    %11 = vector.load %arg4[%c0_9, %c128] : memref<32x256xf32, #tpu.memory_space<vmem>>, vector<32x128xf32>
    tpu.vector_store %arg4[%c0_9, %c128], %9 {strides = array<i32>} : memref<32x256xf32, #tpu.memory_space<vmem>>, vector<32x128xf32>,
    return
  }
  func.func @transform_0(%arg0: i32) -> (i32, i32) {
    %c0_i32 = arith.constant 0 : i32
    %c0_i32_0 = arith.constant 0 : i32
    %c0_i32_1 = arith.constant 0 : i32
    return %c0_i32, %c0_i32_0 : i32, i32
  }
  func.func @transform_1(%arg0: i32) -> (i32, i32) {
    %c0_i32 = arith.constant 0 : i32
    %c0_i32_0 = arith.constant 0 : i32
    return %c0_i32, %arg0 : i32, i32
  }
  func.func @transform_2(%arg0: i32) -> (i32, i32) {
    %c0_i32 = arith.constant 0 : i32
    %c0_i32_0 = arith.constant 0 : i32
    return %c0_i32, %arg0 : i32, i32
  }
  func.func @transform_3(%arg0: i32) -> (i32, i32) {
    %c0_i32 = arith.constant 0 : i32
    %c0_i32_0 = arith.constant 0 : i32
    return %c0_i32, %arg0 : i32, i32
  }
}

module attributes {stable_mosaic.version = 11 : i64} {
  func.func @_bn_relu_kernel(%arg0: i32, %arg1: memref<32x128xbf16, #tpu.memory_space<vmem>>, %arg2: memref<32x1xf32, #tpu.memory_space<vmem>>, %arg3: memref<32x1xf32, #tpu.memory_space<vmem>>, %arg4: memref<32x128xf32, #tpu.memory_space<vmem>>) attributes {dimension_semantics = [#tpu.dimension_semantics<parallel>], iteration_bounds = array<i64: 4>, scalar_prefetch = 0 : i64, scratch_operands = 0 : i64, tpu.core_type = #tpu.core_type<tc>, window_params = [{transform_indices = @transform_0, window_bounds = array<i64: 32, 128>}, {pipeline_mode = #tpu.pipeline_mode<synchronous>, transform_indices = @transform_1, window_bounds = array<i64: 32, 1>}, {pipeline_mode = #tpu.pipeline_mode<synchronous>, transform_indices = @transform_2, window_bounds = array<i64: 32, 1>}, {transform_indices = @transform_3, window_bounds = array<i64: 32, 128>}]} {
    %c0 = arith.constant 0 : index
    %c0_0 = arith.constant 0 : index
    %0 = vector.load %arg1[%c0, %c0_0] : memref<32x128xbf16, #tpu.memory_space<vmem>>, vector<32x128xbf16>
    %1 = arith.extf %0 : vector<32x128xbf16> to vector<32x128xf32>
    %c0_1 = arith.constant 0 : index
    %c0_2 = arith.constant 0 : index
    %2 = vector.load %arg2[%c0_1, %c0_2] : memref<32x1xf32, #tpu.memory_space<vmem>>, vector<32x1xf32>
    %3 = vector.broadcast %2 : vector<32x1xf32> to vector<32x128xf32>
    %4 = arith.mulf %1, %3 : vector<32x128xf32>
    %c0_3 = arith.constant 0 : index
    %c0_4 = arith.constant 0 : index
    %5 = vector.load %arg3[%c0_3, %c0_4] : memref<32x1xf32, #tpu.memory_space<vmem>>, vector<32x1xf32>
    %6 = vector.broadcast %5 : vector<32x1xf32> to vector<32x128xf32>
    %7 = arith.addf %4, %6 : vector<32x128xf32>
    %cst = arith.constant 0.000000e+00 : f32
    %8 = vector.broadcast %cst : f32 to vector<32x128xf32>
    %9 = arith.maximumf %7, %8 : vector<32x128xf32>
    %c0_5 = arith.constant 0 : index
    %c0_6 = arith.constant 0 : index
    %10 = vector.load %arg4[%c0_5, %c0_6] : memref<32x128xf32, #tpu.memory_space<vmem>>, vector<32x128xf32>
    tpu.vector_store %arg4[%c0_5, %c0_6], %9 {strides = array<i32>} : memref<32x128xf32, #tpu.memory_space<vmem>>, vector<32x128xf32>,
    return
  }
  func.func @transform_0(%arg0: i32) -> (i32, i32) {
    %c0_i32 = arith.constant 0 : i32
    %c0_i32_0 = arith.constant 0 : i32
    return %c0_i32, %arg0 : i32, i32
  }
  func.func @transform_1(%arg0: i32) -> (i32, i32) {
    %c0_i32 = arith.constant 0 : i32
    %c0_i32_0 = arith.constant 0 : i32
    %c0_i32_1 = arith.constant 0 : i32
    return %c0_i32, %c0_i32_0 : i32, i32
  }
  func.func @transform_2(%arg0: i32) -> (i32, i32) {
    %c0_i32 = arith.constant 0 : i32
    %c0_i32_0 = arith.constant 0 : i32
    %c0_i32_1 = arith.constant 0 : i32
    return %c0_i32, %c0_i32_0 : i32, i32
  }
  func.func @transform_3(%arg0: i32) -> (i32, i32) {
    %c0_i32 = arith.constant 0 : i32
    %c0_i32_0 = arith.constant 0 : i32
    return %c0_i32, %arg0 : i32, i32
  }
}

</mosaic_0001>

<llo_original>
// kernel: tile.18
$region0: #{tile.18}
  #allocation0 [shape = 's32[1]{0}', space=sflag, size = 0x4, scoped, tag = 'scoped memory for tile.18']
  %s0 = inlined_call_operand.vmem [shape: f32[8], index: 0, kind: input, shape index: {}]
  %s1 = inlined_call_operand.vmem [shape: f32[4,8], index: 1, kind: output, shape index: {}]
  // Predicated region
  $region2: #{tile.18} parent=0 // pred_check
    _
  $region3: #{tile.18} parent=0 // pred_check_branch
    %3 = sbr.rel (0) target = $region5
  $region4: #{tile.18} parent=0 // pred_region
    _
  $region5: #{tile.18} parent=0 // pred_fallthru
    _
  %v4 = vld [vmem:[%s0] ss:$0 sm:$0xff]
  %5 = vst [vmem:[%s1] sm:$0xf] %v4

// kernel: tile.0
$region0: #{tile.0}
  %s0 = inlined_call_operand.vmem [shape: f32[4,8], index: 0, kind: input, shape index: {}]
  %s1 = inlined_call_operand.vmem [shape: f32[32,1], index: 1, kind: output, shape index: {}]
  $region1: #{tile.0} parent=0
    #allocation0 [shape = 'u8[4096]{0}', space=vmem, size = 0x1000, scoped, tag = 'scoped mem for input reshape']
    %s3 = sshllo.u32 0, 4
    %v4 = vld [vmem:[%s0] sm:%s3]
    %5 = vst [vmem:[#allocation0] sm:%s3] %v4
    %v6 = vld [vmem:[#allocation0] sm:$0xf]
    %vm7 = vcmask 7168
    %8 = vst.msk [vmem:[%s1] ss:$8 sm:$0xf] %vm7, %v6
    %v9 = vld [vmem:[#allocation0] sm:$0xf]
    %10 = vrot.lane.b32.xlu0 %v9, 127
    %v11 = vpop.permute.xlu0 %10
    %vm12 = vcmask 7168
    %s13 = scalar_lea.vmem %s1, 1
    %14 = vst.msk [vmem:[%s13] ss:$8 sm:$0xf] %vm12, %v11
    %v15 = vld [vmem:[#allocation0] sm:$0xf]
    %16 = vrot.lane.b32.xlu0 %v15, 126
    %v17 = vpop.permute.xlu0 %16
    %vm18 = vcmask 7168
    %s19 = scalar_lea.vmem %s1, 2
    %20 = vst.msk [vmem:[%s19] ss:$8 sm:$0xf] %vm18, %v17
    %v21 = vld [vmem:[#allocation0] sm:$0xf]
    %22 = vrot.lane.b32.xlu0 %v21, 125
    %v23 = vpop.permute.xlu0 %22
    %vm24 = vcmask 7168
    %s25 = scalar_lea.vmem %s1, 3
    %26 = vst.msk [vmem:[%s25] ss:$8 sm:$0xf] %vm24, %v23
    %v27 = vld [vmem:[#allocation0] sm:$0xf]
    %28 = vrot.lane.b32.xlu0 %v27, 124
    %v29 = vpop.permute.xlu0 %28
    %vm30 = vcmask 7168
    %s31 = scalar_lea.vmem %s1, 4
    %32 = vst.msk [vmem:[%s31] ss:$8 sm:$0xf] %vm30, %v29
    %v33 = vld [vmem:[#allocation0] sm:$0xf]
    %34 = vrot.lane.b32.xlu0 %v33, 123
    %v35 = vpop.permute.xlu0 %34
    %vm36 = vcmask 7168
    %s37 = scalar_lea.vmem %s1, 5
    %38 = vst.msk [vmem:[%s37] ss:$8 sm:$0xf] %vm36, %v35
    %v39 = vld [vmem:[#allocation0] sm:$0xf]
    %40 = vrot.lane.b32.xlu0 %v39, 122
    %v41 = vpop.permute.xlu0 %40
    %vm42 = vcmask 7168
    %s43 = scalar_lea.vmem %s1, 6
    %44 = vst.msk [vmem:[%s43] ss:$8 sm:$0xf] %vm42, %v41
    %v45 = vld [vmem:[#allocation0] sm:$0xf]
    %46 = vrot.lane.b32.xlu0 %v45, 121
    %v47 = vpop.permute.xlu0 %46
    %vm48 = vcmask 7168
    %s49 = scalar_lea.vmem %s1, 7
    %50 = vst.msk [vmem:[%s49] ss:$8 sm:$0xf] %vm48, %v47

// kernel: deconv2d_forward.2
$region0: #{deconv2d_forward.2}
  #allocation0 [shape = 'u32[]', space=smem, size = 0x4, offset = 0x4, fixed_abs, tag = 'smem constant byte address 0x4 - core index']
  #allocation1 [shape = 'u32[144,128]{1,0:T(1,128)}', space=vmem, size = 0x12000, scoped, tag = 'internal scratch']
  %s0 = inlined_call_operand.vmem [shape: bf16[32,16], index: 0, kind: input, shape index: {}]
  %s1 = inlined_call_operand.vmem [shape: bf16[16,512], index: 1, kind: input, shape index: {}]
  %s2 = inlined_call_operand.vmem [shape: bf16[32,512], index: 2, kind: output, shape index: {0}]
  %s3 = inlined_call_operand.vmem [shape: f32[32,1024], index: 3, kind: output, shape index: {1}]
  %4 = xla_tuple %s2, %s3
  %s5 = sld [smem:[#allocation0]]
  $region146: #{deconv2d_forward.2} parent=0
    _
  %s7 = ssub.s32 1, %s5
  %s8 = scalar_select 0, %s7, %s5
  $region1: #{deconv2d_forward.2} parent=0
    #allocation2 [shape = 'u8[8192]{0}', space=vmem, size = 0x2000, scoped, tag = 'input window, operand 1']
    #allocation3 [shape = 'u8[16384]{0}', space=vmem, size = 0x4000, scoped, tag = 'output window, operand 0']
    #allocation4 [shape = 'u8[65536]{0}', space=vmem, size = 0x10000, scoped, tag = 'output window, operand 1']
    loop: start=0, step=1, limit=6
    $region2: #{deconv2d_forward.2} parent=1 // loop_pre_header
      _
    $region3: #{deconv2d_forward.2} parent=1 // loop_header
      %s10 = sphi 0, %s14
      %p11 = scmp.ge.s32.totalorder %s10, 6
      %s18 = sphi 0, %s18
      %s20 = sphi 0, %s18
      %s21 = sphi 0, %s20
      %s35 = sphi 0, %s21
      %s41 = sphi 0, %s43
      %s44 = sphi 0, %s41
      %s45 = sphi 0, %s44
      %s61 = sphi 0, %s45
      %s67 = sphi 0, %s69
      %s70 = sphi 0, %s67
      %s71 = sphi 0, %s70
      %s87 = sphi 0, %s71
      %s93 = sphi 0, %s95
      %s96 = sphi 0, %s93
      %s97 = sphi 0, %s96
      %s113 = sphi 0, %s97
    $region4: #{deconv2d_forward.2} parent=1 // loop_header_branch
      %13 = sbr.rel (%p11) target = $region8
    $region5: #{deconv2d_forward.2} parent=1 // loop_body
      %s15 = ssub.s32 %s10, 1
      %s16 = ssub.s32 %s10, 2
      %s17 = sadd.s32 %s10, 1
      %s19 = sadd.s32 %s18, 1
      %p22 = scmp.eq.s32.totalorder %s10, 3
      %p23 = scmp.ne.s32.totalorder %s18, %s20
      %p24 = scmp.eq.s32.totalorder %s10, 0
      %p25 = por %p23, %p24
      %p26 = scmp.ne.s32.totalorder %s18, %s20
      %p27 = scmp.eq.s32.totalorder %s15, 3
      %p28 = por %p26, %p27
      %p29 = scmp.ne.s32.totalorder %s20, %s21
      %p30 = scmp.eq.s32.totalorder %s15, 0
      %p31 = por %p29, %p30
      %p32 = scmp.ne.s32.totalorder %s20, %s21
      %p33 = scmp.eq.s32.totalorder %s16, 3
      %p34 = por %p32, %p33
      %p36 = scmp.ne.s32.totalorder %s21, %s35
      %p37 = scmp.eq.s32.totalorder %s16, 0
      %p38 = por %p36, %p37
      %s39 = ssub.s32 %s10, %s17
      %p40 = scmp.eq.s32.totalorder %s39, 0
      %s42 = sadd.s32 %s41, 1
      %s43 = scalar_select %p40, %s41, %s42
      %p46 = pneg %p40
      %p47 = scmp.eq.s32.totalorder %s10, 3
      %p48 = por %p46, %p47
      %p49 = scmp.ne.s32.totalorder %s41, %s44
      %p50 = scmp.eq.s32.totalorder %s10, 0
      %p51 = por %p49, %p50
      %p52 = scmp.ne.s32.totalorder %s41, %s44
      %p53 = scmp.eq.s32.totalorder %s15, 3
      %p54 = por %p52, %p53
      %p55 = scmp.ne.s32.totalorder %s44, %s45
      %p56 = scmp.eq.s32.totalorder %s15, 0
      %p57 = por %p55, %p56
      %p58 = scmp.ne.s32.totalorder %s44, %s45
      %p59 = scmp.eq.s32.totalorder %s16, 3
      %p60 = por %p58, %p59
      %p62 = scmp.ne.s32.totalorder %s45, %s61
      %p63 = scmp.eq.s32.totalorder %s16, 0
      %p64 = por %p62, %p63
      %s65 = ssub.s32 %s10, %s17
      %p66 = scmp.eq.s32.totalorder %s65, 0
      %s68 = sadd.s32 %s67, 1
      %s69 = scalar_select %p66, %s67, %s68
      %p72 = pneg %p66
      %p73 = scmp.eq.s32.totalorder %s10, 3
      %p74 = por %p72, %p73
      %p75 = scmp.ne.s32.totalorder %s67, %s70
      %p76 = scmp.eq.s32.totalorder %s10, 0
      %p77 = por %p75, %p76
      %p78 = scmp.ne.s32.totalorder %s67, %s70
      %p79 = scmp.eq.s32.totalorder %s15, 3
      %p80 = por %p78, %p79
      %p81 = scmp.ne.s32.totalorder %s70, %s71
      %p82 = scmp.eq.s32.totalorder %s15, 0
      %p83 = por %p81, %p82
      %p84 = scmp.ne.s32.totalorder %s70, %s71
      %p85 = scmp.eq.s32.totalorder %s16, 3
      %p86 = por %p84, %p85
      %p88 = scmp.ne.s32.totalorder %s71, %s87
      %p89 = scmp.eq.s32.totalorder %s16, 0
      %p90 = por %p88, %p89
      %s91 = ssub.s32 %s10, %s17
      %p92 = scmp.eq.s32.totalorder %s91, 0
      %s94 = sadd.s32 %s93, 1
      %s95 = scalar_select %p92, %s93, %s94
      %p98 = pneg %p92
      %p99 = scmp.eq.s32.totalorder %s10, 3
      %p100 = por %p98, %p99
      %p101 = scmp.ne.s32.totalorder %s93, %s96
      %p102 = scmp.eq.s32.totalorder %s10, 0
      %p103 = por %p101, %p102
      %p104 = scmp.ne.s32.totalorder %s93, %s96
      %p105 = scmp.eq.s32.totalorder %s15, 3
      %p106 = por %p104, %p105
      %p107 = scmp.ne.s32.totalorder %s96, %s97
      %p108 = scmp.eq.s32.totalorder %s15, 0
      %p109 = por %p107, %p108
      %p110 = scmp.ne.s32.totalorder %s96, %s97
      %p111 = scmp.eq.s32.totalorder %s16, 3
      %p112 = por %p110, %p111
      %p114 = scmp.ne.s32.totalorder %s97, %s113
      %p115 = scmp.eq.s32.totalorder %s16, 0
      %p116 = por %p114, %p115
      %p117 = scmp.le.s32.totalorder 1, %s10
      %p118 = scmp.lt.s32.totalorder %s10, 5
      %p119 = pnand %p117, %p118
      %p120 = pneg %p119
      // Predicated region
      $region9: #{deconv2d_forward.2} parent=5 // pred_check
        _
      $region10: #{deconv2d_forward.2} parent=5 // pred_check_branch
        %122 = sbr.rel (%p119) target = $region12
      $region11: #{deconv2d_forward.2} parent=5 // pred_region
        %s123 = ssub.s32 %s10, 1
        // Predicated region
        $region13: #{deconv2d_forward.2} parent=11 // pred_check
          %p124 = pneg %p31
        $region14: #{deconv2d_forward.2} parent=11 // pred_check_branch
          %126 = sbr.rel (%p124) target = $region16
        $region15: #{deconv2d_forward.2} parent=11 // pred_region
          _
        $region16: #{deconv2d_forward.2} parent=11 // pred_fallthru
          _
      $region12: #{deconv2d_forward.2} parent=5 // pred_fallthru
        _
      %p127 = scmp.lt.s32.totalorder %s10, 4
      // Predicated region
      $region17: #{deconv2d_forward.2} parent=5 // pred_check
        %p128 = pneg %p127
      $region18: #{deconv2d_forward.2} parent=5 // pred_check_branch
        %130 = sbr.rel (%p128) target = $region20
      $region19: #{deconv2d_forward.2} parent=5 // pred_region
        // Predicated region
        $region21: #{deconv2d_forward.2} parent=19 // pred_check
          %p131 = pneg %p51
        $region22: #{deconv2d_forward.2} parent=19 // pred_check_branch
          %133 = sbr.rel (%p131) target = $region24
        $region23: #{deconv2d_forward.2} parent=19 // pred_region
          %s134 = sand.u32 %s41, 1
          %s135 = sand.u32 %s41, 1
          %s136 = smul.addr %s135, 8
          %s137 = scalar_lea.vmem [#allocation2], %s136
          %s138 = smul.addr %s10, 4
          %s139 = scalar_lea.vmem %s1, %s138
          // Predicated region
          $region25: #{deconv2d_forward.2} parent=23 // pred_check
            _
          $region26: #{deconv2d_forward.2} parent=23 // pred_check_branch
            %141 = sbr.rel (0) target = $region28
          $region27: #{deconv2d_forward.2} parent=23 // pred_region
            // Predicated region
            $region29: #{deconv2d_forward.2} parent=27 // pred_check
              _
            $region30: #{deconv2d_forward.2} parent=27 // pred_check_branch
              %143 = sbr.rel target = $region32
            $region31: #{deconv2d_forward.2} parent=27 // pred_region
              // Predicated region
              $region44: #{deconv2d_forward.2} parent=31 // pred_check
                _
              $region45: #{deconv2d_forward.2} parent=31 // pred_check_branch
                %160 = sbr.rel (0) target = $region47
              $region46: #{deconv2d_forward.2} parent=31 // pred_region
                loop: start=0, step=1, limit=1
                $region48: #{deconv2d_forward.2} parent=46 // loop_pre_header
                  _
                $region49: #{deconv2d_forward.2} parent=46 // loop_header
                  %s162 = sphi 0, %s166
                  %p163 = scmp.ge.s32.totalorder %s162, 1
                  %s167 = sphi %s139, %s139
                  %s168 = sphi %s137, %s137
                $region50: #{deconv2d_forward.2} parent=46 // loop_header_branch
                  %165 = sbr.rel (%p163) target = $region54
                $region51: #{deconv2d_forward.2} parent=46 // loop_body
                  _
                $region52: #{deconv2d_forward.2} parent=46 // loop_footer
                  %s166 = sadd.s32 1, %s162
                $region53: #{deconv2d_forward.2} parent=46 // loop_footer_branch
                  %161 = sbr.rel target = $region49
                $region54: #{deconv2d_forward.2} parent=46 // loop_exit
                  _
                loop: start=0, step=1, limit=1
                $region55: #{deconv2d_forward.2} parent=46 // loop_pre_header
                  _
                $region56: #{deconv2d_forward.2} parent=46 // loop_header
                  %s171 = sphi 0, %s175
                  %p172 = scmp.ge.s32.totalorder %s171, 1
                  %s176 = sphi %s139, %s139
                  %s177 = sphi %s137, %s137
                $region57: #{deconv2d_forward.2} parent=46 // loop_header_branch
                  %174 = sbr.rel (%p172) target = $region61
                $region58: #{deconv2d_forward.2} parent=46 // loop_body
                  %v178 = vld [vmem:[%s176] sm:$0xf]
                  %179 = vst [vmem:[%s177] sm:$0xf] %v178
                  %v180 = vld [vmem:[%s176 + $0x10] sm:$0xf]
                  %181 = vst [vmem:[%s177 + $0x4] sm:$0xf] %v180
                $region59: #{deconv2d_forward.2} parent=46 // loop_footer
                  %s175 = sadd.s32 1, %s171
                $region60: #{deconv2d_forward.2} parent=46 // loop_footer_branch
                  %170 = sbr.rel target = $region56
                $region61: #{deconv2d_forward.2} parent=46 // loop_exit
                  _
              $region47: #{deconv2d_forward.2} parent=31 // pred_fallthru
                _
            $region32: #{deconv2d_forward.2} parent=27 // pred_fallthru
              _
            // Predicated region
            $region33: #{deconv2d_forward.2} parent=27 // pred_check
              _
            $region34: #{deconv2d_forward.2} parent=27 // pred_check_branch
              %145 = sbr.rel (0) target = $region36
            $region35: #{deconv2d_forward.2} parent=27 // pred_region
              loop: start=0, step=1, limit=1
              $region37: #{deconv2d_forward.2} parent=35 // loop_pre_header
                _
              $region38: #{deconv2d_forward.2} parent=35 // loop_header
                %s148 = sphi 0, %s152
                %p149 = scmp.ge.s32.totalorder %s148, 1
                %s153 = sphi %s139, %s139
                %s154 = sphi %s137, %s137
              $region39: #{deconv2d_forward.2} parent=35 // loop_header_branch
                %151 = sbr.rel (%p149) target = $region43
              $region40: #{deconv2d_forward.2} parent=35 // loop_body
                %v155 = vld [vmem:[%s153] sm:$0xf]
                %156 = vst [vmem:[%s154] sm:$0xf] %v155
                %v157 = vld [vmem:[%s153 + $0x10] sm:$0xf]
                %158 = vst [vmem:[%s154 + $0x4] sm:$0xf] %v157
              $region41: #{deconv2d_forward.2} parent=35 // loop_footer
                %s152 = sadd.s32 1, %s148
              $region42: #{deconv2d_forward.2} parent=35 // loop_footer_branch
                %147 = sbr.rel target = $region38
              $region43: #{deconv2d_forward.2} parent=35 // loop_exit
                _
            $region36: #{deconv2d_forward.2} parent=27 // pred_fallthru
              _
          $region28: #{deconv2d_forward.2} parent=23 // pred_fallthru
            _
          %182 = vnop
        $region24: #{deconv2d_forward.2} parent=19 // pred_fallthru
          _
      $region20: #{deconv2d_forward.2} parent=5 // pred_fallthru
        _
      %p183 = scmp.le.s32.totalorder 1, %s10
      %p184 = scmp.lt.s32.totalorder %s10, 5
      %p185 = pnand %p183, %p184
      %p186 = pneg %p185
      // Predicated region
      $region62: #{deconv2d_forward.2} parent=5 // pred_check
        _
      $region63: #{deconv2d_forward.2} parent=5 // pred_check_branch
        %188 = sbr.rel (%p185) target = $region65
      $region64: #{deconv2d_forward.2} parent=5 // pred_region
        %s189 = ssub.s32 %s10, 1
        %s190 = sand.u32 %s44, 1
        %s191 = sand.u32 %s44, 1
        %s192 = smul.addr %s191, 8
        %s193 = scalar_lea.vmem [#allocation2], %s192
        // Predicated region
        $region66: #{deconv2d_forward.2} parent=64 // pred_check
          %p194 = pneg %p57
        $region67: #{deconv2d_forward.2} parent=64 // pred_check_branch
          %196 = sbr.rel (%p194) target = $region69
        $region68: #{deconv2d_forward.2} parent=64 // pred_region
          _
        $region69: #{deconv2d_forward.2} parent=64 // pred_fallthru
          _
        %p197 = pneg %p31
        %p198 = pneg %p28
        %s199 = sand.u32 %s44, 1
        %s200 = sand.u32 %s44, 1
        %s201 = smul.addr %s200, 8
        %s202 = scalar_lea.vmem [#allocation2], %s201
        %p203 = pneg %p57
        %p204 = pneg %p54
        %p205 = pneg %p83
        %p206 = pneg %p80
        %s207 = sand.u32 %s70, 1
        %s208 = sand.u32 %s70, 1
        %s209 = smul.addr %s208, 16
        %s210 = scalar_lea.vmem [#allocation3], %s209
        %p211 = pneg %p109
        %p212 = pneg %p106
        %s213 = sand.u32 %s96, 1
        %s214 = sand.u32 %s96, 1
        %s215 = smul.addr %s214, 64
        %s216 = scalar_lea.vmem [#allocation4], %s215
        %s217 = smul.u32 2, %s15
        %v219 = vld [vmem:[%s0] sm:$0xf]
        %v220 = vld [vmem:[%s0 + $0x4] sm:$0xf]
        %v221 = vld [vmem:[%s0 + $0x8] sm:$0xf]
        %v222 = vld [vmem:[%s0 + $0xc] sm:$0xf]
        %v223 = vld [vmem:[%s193] sm:$0xf]
        %v224 = vld [vmem:[%s193 + $0x4] sm:$0xf]
        %v229 = vunpack.c.l.b16 %v219
        %v230 = vunpack.c.l.b16 %v220
        %v231 = vunpack.c.l.b16 %v221
        %v232 = vunpack.c.l.b16 %v222
        %v233 = vpack.c.b16 %v230, %v229
        %v234 = vpack.c.b16 %v232, %v231
        %v237 = vunpack.c.l.b16 %v223
        %v238 = vunpack.c.l.b16 %v224
        %v239 = vpack.c.b16 %v238, %v237
        %vm241 = vcmask 130048
        %v243 = vsel %vm241, %v233, 0
        %v246 = vsel %vm241, %v234, 0
        %248 = vmatprep.subr.bf16.mxu0 0
        %249 = vmatpush1.bf16.msra.mxu0 %v239
        %250 = vmatprep.subr.bf16.mxu0 0
        %251 = vmatpush1.bf16.msra.mxu0 0
        %252 = vmatprep.subr.bf16.mxu0 0
        %253 = vmatpush1.bf16.msra.mxu0 0
        %254 = vmatprep.subr.bf16.mxu0 0
        %255 = vmatpush1.bf16.msra.mxu0 0
        %256 = vmatprep.subr.bf16.mxu0 0
        %257 = vmatpush1.bf16.msra.mxu0 0
        %258 = vmatprep.subr.bf16.mxu0 0
        %259 = vmatpush1.bf16.msra.mxu0 0
        %260 = vmatprep.subr.bf16.mxu0 0
        %261 = vmatpush1.bf16.msra.mxu0 0
        %262 = vmatprep.subr.bf16.mxu0 0
        %263 = vmatpush1.bf16.msra.mxu0 0
        %264 = vmatprep.subr.bf16.mxu0 0
        %265 = vmatpush1.bf16.msra.mxu0 0
        %266 = vmatprep.subr.bf16.mxu0 0
        %267 = vmatpush1.bf16.msra.mxu0 0
        %268 = vmatprep.subr.bf16.mxu0 0
        %269 = vmatpush1.bf16.msra.mxu0 0
        %270 = vmatprep.subr.bf16.mxu0 0
        %271 = vmatpush1.bf16.msra.mxu0 0
        %272 = vmatprep.subr.bf16.mxu0 0
        %273 = vmatpush1.bf16.msra.mxu0 0
        %274 = vmatprep.subr.bf16.mxu0 0
        %275 = vmatpush1.bf16.msra.mxu0 0
        %276 = vmatprep.subr.bf16.mxu0 0
        %277 = vmatpush1.bf16.msra.mxu0 0
        %278 = vmatprep.subr.bf16.mxu0 0
        %279 = vmatpush1.bf16.msra.mxu0 0
        %280 = vmatprep.mubr.bf16.mxu0 0
        %281 = vmatmul.mubr.bf16.gmra.mrb[0].mxu0 %v243
        %v282 = vpop.f32.mrb[0].mxu0
        %v283 = vadd.f32 0.0, %v282
        %v284 = vpop.f32.mrb[0].mxu0
        %v285 = vpop.f32.mrb[0].mxu0
        %v286 = vadd.f32 0.0, %v285
        %v287 = vpop.f32.mrb[0].mxu0
        %288 = vmatprep.mubr.bf16.mxu0 0
        %289 = vmatmul.mubr.bf16.gmra.mrb[0].mxu0 %v246
        %v290 = vpop.f32.mrb[0].mxu0
        %v291 = vadd.f32 0.0, %v290
        %v292 = vpop.f32.mrb[0].mxu0
        %v293 = vpop.f32.mrb[0].mxu0
        %v294 = vadd.f32 0.0, %v293
        %v295 = vpop.f32.mrb[0].mxu0
        %296 = vdwg.mxu0
        %v297 = vpack.c.bf16 %v286, %v283
        %v298 = vpack.c.bf16 %v294, %v291
        %v301 = vunpack.c.l.b16 %v297
        %v302 = vunpack.c.h.b16 %v297
        %v303 = vunpack.c.l.b16 %v298
        %v304 = vunpack.c.h.b16 %v298
        %v305 = vpack.c.b16 %v301, %v301
        %v306 = vpack.c.b16 %v302, %v302
        %v307 = vpack.c.b16 %v303, %v303
        %v308 = vpack.c.b16 %v304, %v304
        %313 = vst [vmem:[%s210] sm:$0xf] %v305
        %314 = vst [vmem:[%s210 + $0x4] sm:$0xf] %v306
        %315 = vst [vmem:[%s210 + $0x8] sm:$0xf] %v307
        %316 = vst [vmem:[%s210 + $0xc] sm:$0xf] %v308
        %v317 = vadd.f32 %v283, 0.0
        %v318 = vadd.f32 %v286, 0.0
        %v319 = vadd.f32 %v291, 0.0
        %v320 = vadd.f32 %v294, 0.0
        %v321 = vmul.f32 %v283, %v283
        %v322 = vmul.f32 %v286, %v286
        %v323 = vmul.f32 %v291, %v291
        %v324 = vmul.f32 %v294, %v294
        %v325 = vadd.f32 %v321, 0.0
        %v326 = vadd.f32 %v322, 0.0
        %v327 = vadd.f32 %v323, 0.0
        %v328 = vadd.f32 %v324, 0.0
        %329 = vst [vmem:[%s216] sm:$0xff] %v317
        %330 = vst [vmem:[%s216 + $0x10] sm:$0xff] %v318
        %331 = vst [vmem:[%s216 + $0x20] sm:$0xff] %v319
        %332 = vst [vmem:[%s216 + $0x30] sm:$0xff] %v320
        %333 = vst [vmem:[%s216 + $0x8] sm:$0xff] %v325
        %334 = vst [vmem:[%s216 + $0x18] sm:$0xff] %v326
        %335 = vst [vmem:[%s216 + $0x28] sm:$0xff] %v327
        %336 = vst [vmem:[%s216 + $0x38] sm:$0xff] %v328
        %s337 = sand.u32 %s70, 1
        %s338 = sand.u32 %s70, 1
        %s339 = smul.addr %s338, 16
        %s340 = scalar_lea.vmem [#allocation3], %s339
        %s341 = sand.u32 %s96, 1
        %s342 = sand.u32 %s96, 1
        %s343 = smul.addr %s342, 64
        %s344 = scalar_lea.vmem [#allocation4], %s343
        // Predicated region
        $region70: #{deconv2d_forward.2} parent=64 // pred_check
          %p345 = pneg %p80
        $region71: #{deconv2d_forward.2} parent=64 // pred_check_branch
          %347 = sbr.rel (%p345) target = $region73
        $region72: #{deconv2d_forward.2} parent=64 // pred_region
          %s348 = smul.addr %s15, 4
          %s349 = scalar_lea.vmem %s2, %s348
          // Predicated region
          $region74: #{deconv2d_forward.2} parent=72 // pred_check
            _
          $region75: #{deconv2d_forward.2} parent=72 // pred_check_branch
            %351 = sbr.rel (0) target = $region77
          $region76: #{deconv2d_forward.2} parent=72 // pred_region
            // Predicated region
            $region78: #{deconv2d_forward.2} parent=76 // pred_check
              _
            $region79: #{deconv2d_forward.2} parent=76 // pred_check_branch
              %353 = sbr.rel target = $region81
            $region80: #{deconv2d_forward.2} parent=76 // pred_region
              // Predicated region
              $region93: #{deconv2d_forward.2} parent=80 // pred_check
                _
              $region94: #{deconv2d_forward.2} parent=80 // pred_check_branch
                %374 = sbr.rel (0) target = $region96
              $region95: #{deconv2d_forward.2} parent=80 // pred_region
                loop: start=0, step=1, limit=1
                $region97: #{deconv2d_forward.2} parent=95 // loop_pre_header
                  _
                $region98: #{deconv2d_forward.2} parent=95 // loop_header
                  %s376 = sphi 0, %s380
                  %p377 = scmp.ge.s32.totalorder %s376, 1
                  %s381 = sphi %s340, %s340
                  %s382 = sphi %s349, %s349
                $region99: #{deconv2d_forward.2} parent=95 // loop_header_branch
                  %379 = sbr.rel (%p377) target = $region103
                $region100: #{deconv2d_forward.2} parent=95 // loop_body
                  _
                $region101: #{deconv2d_forward.2} parent=95 // loop_footer
                  %s380 = sadd.s32 1, %s376
                $region102: #{deconv2d_forward.2} parent=95 // loop_footer_branch
                  %375 = sbr.rel target = $region98
                $region103: #{deconv2d_forward.2} parent=95 // loop_exit
                  _
                loop: start=0, step=1, limit=1
                $region104: #{deconv2d_forward.2} parent=95 // loop_pre_header
                  _
                $region105: #{deconv2d_forward.2} parent=95 // loop_header
                  %s385 = sphi 0, %s389
                  %p386 = scmp.ge.s32.totalorder %s385, 1
                  %s390 = sphi %s340, %s340
                  %s391 = sphi %s349, %s349
                $region106: #{deconv2d_forward.2} parent=95 // loop_header_branch
                  %388 = sbr.rel (%p386) target = $region110
                $region107: #{deconv2d_forward.2} parent=95 // loop_body
                  %v392 = vld [vmem:[%s390] sm:$0xf]
                  %393 = vst [vmem:[%s391] sm:$0xf] %v392
                  %v394 = vld [vmem:[%s390 + $0x4] sm:$0xf]
                  %395 = vst [vmem:[%s391 + $0x10] sm:$0xf] %v394
                  %v396 = vld [vmem:[%s390 + $0x8] sm:$0xf]
                  %397 = vst [vmem:[%s391 + $0x20] sm:$0xf] %v396
                  %v398 = vld [vmem:[%s390 + $0xc] sm:$0xf]
                  %399 = vst [vmem:[%s391 + $0x30] sm:$0xf] %v398
                $region108: #{deconv2d_forward.2} parent=95 // loop_footer
                  %s389 = sadd.s32 1, %s385
                $region109: #{deconv2d_forward.2} parent=95 // loop_footer_branch
                  %384 = sbr.rel target = $region105
                $region110: #{deconv2d_forward.2} parent=95 // loop_exit
                  _
              $region96: #{deconv2d_forward.2} parent=80 // pred_fallthru
                _
            $region81: #{deconv2d_forward.2} parent=76 // pred_fallthru
              _
            // Predicated region
            $region82: #{deconv2d_forward.2} parent=76 // pred_check
              _
            $region83: #{deconv2d_forward.2} parent=76 // pred_check_branch
              %355 = sbr.rel (0) target = $region85
            $region84: #{deconv2d_forward.2} parent=76 // pred_region
              loop: start=0, step=1, limit=1
              $region86: #{deconv2d_forward.2} parent=84 // loop_pre_header
                _
              $region87: #{deconv2d_forward.2} parent=84 // loop_header
                %s358 = sphi 0, %s362
                %p359 = scmp.ge.s32.totalorder %s358, 1
                %s363 = sphi %s340, %s340
                %s364 = sphi %s349, %s349
              $region88: #{deconv2d_forward.2} parent=84 // loop_header_branch
                %361 = sbr.rel (%p359) target = $region92
              $region89: #{deconv2d_forward.2} parent=84 // loop_body
                %v365 = vld [vmem:[%s363] sm:$0xf]
                %366 = vst [vmem:[%s364] sm:$0xf] %v365
                %v367 = vld [vmem:[%s363 + $0x4] sm:$0xf]
                %368 = vst [vmem:[%s364 + $0x10] sm:$0xf] %v367
                %v369 = vld [vmem:[%s363 + $0x8] sm:$0xf]
                %370 = vst [vmem:[%s364 + $0x20] sm:$0xf] %v369
                %v371 = vld [vmem:[%s363 + $0xc] sm:$0xf]
                %372 = vst [vmem:[%s364 + $0x30] sm:$0xf] %v371
              $region90: #{deconv2d_forward.2} parent=84 // loop_footer
                %s362 = sadd.s32 1, %s358
              $region91: #{deconv2d_forward.2} parent=84 // loop_footer_branch
                %357 = sbr.rel target = $region87
              $region92: #{deconv2d_forward.2} parent=84 // loop_exit
                _
            $region85: #{deconv2d_forward.2} parent=76 // pred_fallthru
              _
          $region77: #{deconv2d_forward.2} parent=72 // pred_fallthru
            _
          %400 = vnop
        $region73: #{deconv2d_forward.2} parent=64 // pred_fallthru
          _
        // Predicated region
        $region111: #{deconv2d_forward.2} parent=64 // pred_check
          %p401 = pneg %p106
        $region112: #{deconv2d_forward.2} parent=64 // pred_check_branch
          %403 = sbr.rel (%p401) target = $region114
        $region113: #{deconv2d_forward.2} parent=64 // pred_region
          %s404 = smul.u32 2, %s15
          %s405 = smul.addr %s404, 8
          %s406 = scalar_lea.vmem %s3, %s405
          // Predicated region
          $region115: #{deconv2d_forward.2} parent=113 // pred_check
            _
          $region116: #{deconv2d_forward.2} parent=113 // pred_check_branch
            %408 = sbr.rel (0) target = $region118
          $region117: #{deconv2d_forward.2} parent=113 // pred_region
            // Predicated region
            $region119: #{deconv2d_forward.2} parent=117 // pred_check
              _
            $region120: #{deconv2d_forward.2} parent=117 // pred_check_branch
              %410 = sbr.rel (0) target = $region122
            $region121: #{deconv2d_forward.2} parent=117 // pred_region
              loop: start=0, step=1, limit=1
              $region123: #{deconv2d_forward.2} parent=121 // loop_pre_header
                _
              $region124: #{deconv2d_forward.2} parent=121 // loop_header
                %s412 = sphi 0, %s416
                %p413 = scmp.ge.s32.totalorder %s412, 1
                %s417 = sphi %s344, %s344
                %s418 = sphi %s406, %s406
              $region125: #{deconv2d_forward.2} parent=121 // loop_header_branch
                %415 = sbr.rel (%p413) target = $region129
              $region126: #{deconv2d_forward.2} parent=121 // loop_body
                %v419 = vld [vmem:[%s417] sm:$0xff]
                %420 = vst [vmem:[%s418] sm:$0xff] %v419
                %v421 = vld [vmem:[%s417 + $0x8] sm:$0xff]
                %422 = vst [vmem:[%s418 + $0x8] sm:$0xff] %v421
                %v423 = vld [vmem:[%s417 + $0x10] sm:$0xff]
                %424 = vst [vmem:[%s418 + $0x40] sm:$0xff] %v423
                %v425 = vld [vmem:[%s417 + $0x18] sm:$0xff]
                %426 = vst [vmem:[%s418 + $0x48] sm:$0xff] %v425
                %v427 = vld [vmem:[%s417 + $0x20] sm:$0xff]
                %428 = vst [vmem:[%s418 + $0x80] sm:$0xff] %v427
                %v429 = vld [vmem:[%s417 + $0x28] sm:$0xff]
                %430 = vst [vmem:[%s418 + $0x88] sm:$0xff] %v429
                %v431 = vld [vmem:[%s417 + $0x30] sm:$0xff]
                %432 = vst [vmem:[%s418 + $0xc0] sm:$0xff] %v431
                %v433 = vld [vmem:[%s417 + $0x38] sm:$0xff]
                %434 = vst [vmem:[%s418 + $0xc8] sm:$0xff] %v433
              $region127: #{deconv2d_forward.2} parent=121 // loop_footer
                %s416 = sadd.s32 1, %s412
              $region128: #{deconv2d_forward.2} parent=121 // loop_footer_branch
                %411 = sbr.rel target = $region124
              $region129: #{deconv2d_forward.2} parent=121 // loop_exit
                _
            $region122: #{deconv2d_forward.2} parent=117 // pred_fallthru
              _
            // Predicated region
            $region130: #{deconv2d_forward.2} parent=117 // pred_check
              _
            $region131: #{deconv2d_forward.2} parent=117 // pred_check_branch
              %436 = sbr.rel target = $region133
            $region132: #{deconv2d_forward.2} parent=117 // pred_region
              _
            $region133: #{deconv2d_forward.2} parent=117 // pred_fallthru
              _
          $region118: #{deconv2d_forward.2} parent=113 // pred_fallthru
            _
          %437 = vnop
        $region114: #{deconv2d_forward.2} parent=64 // pred_fallthru
          _
      $region65: #{deconv2d_forward.2} parent=5 // pred_fallthru
        _
      %p438 = scmp.le.s32.totalorder 2, %s10
      // Predicated region
      $region134: #{deconv2d_forward.2} parent=5 // pred_check
        %p439 = pneg %p438
      $region135: #{deconv2d_forward.2} parent=5 // pred_check_branch
        %441 = sbr.rel (%p439) target = $region137
      $region136: #{deconv2d_forward.2} parent=5 // pred_region
        %s442 = ssub.s32 %s10, 2
        // Predicated region
        $region138: #{deconv2d_forward.2} parent=136 // pred_check
          %p443 = pneg %p86
        $region139: #{deconv2d_forward.2} parent=136 // pred_check_branch
          %445 = sbr.rel (%p443) target = $region141
        $region140: #{deconv2d_forward.2} parent=136 // pred_region
          %s446 = sand.u32 %s71, 1
          %s447 = sand.u32 %s71, 1
          %s448 = smul.addr %s447, 16
          %s449 = scalar_lea.vmem [#allocation3], %s448
        $region141: #{deconv2d_forward.2} parent=136 // pred_fallthru
          _
        // Predicated region
        $region142: #{deconv2d_forward.2} parent=136 // pred_check
          %p450 = pneg %p112
        $region143: #{deconv2d_forward.2} parent=136 // pred_check_branch
          %452 = sbr.rel (%p450) target = $region145
        $region144: #{deconv2d_forward.2} parent=136 // pred_region
          %s453 = sand.u32 %s97, 1
          %s454 = sand.u32 %s97, 1
          %s455 = smul.addr %s454, 64
          %s456 = scalar_lea.vmem [#allocation4], %s455
        $region145: #{deconv2d_forward.2} parent=136 // pred_fallthru
          _
      $region137: #{deconv2d_forward.2} parent=5 // pred_fallthru
        _
    $region6: #{deconv2d_forward.2} parent=1 // loop_footer
      %s14 = sadd.s32 1, %s10
    $region7: #{deconv2d_forward.2} parent=1 // loop_footer_branch
      %9 = sbr.rel target = $region3
    $region8: #{deconv2d_forward.2} parent=1 // loop_exit
      _

// kernel: deconv2d_forward.3
$region0: #{deconv2d_forward.3}
  #allocation0 [shape = 'u32[]', space=smem, size = 0x4, offset = 0x4, fixed_abs, tag = 'smem constant byte address 0x4 - core index']
  #allocation1 [shape = 'u32[144,128]{1,0:T(1,128)}', space=vmem, size = 0x12000, scoped, tag = 'internal scratch']
  %s0 = inlined_call_operand.vmem [shape: bf16[32,512], index: 0, kind: input, shape index: {}]
  %s1 = inlined_call_operand.vmem [shape: f32[32,1], index: 1, kind: input, shape index: {}]
  %s2 = inlined_call_operand.vmem [shape: f32[32,1], index: 2, kind: input, shape index: {}]
  %s3 = inlined_call_operand.vmem [shape: f32[32,512], index: 3, kind: output, shape index: {}]
  %s4 = sld [smem:[#allocation0]]
  $region120: #{deconv2d_forward.3} parent=0
    _
  %s6 = ssub.s32 1, %s4
  %s7 = scalar_select 0, %s6, %s4
  $region1: #{deconv2d_forward.3} parent=0
    #allocation2 [shape = 'u8[16384]{0}', space=vmem, size = 0x4000, scoped, tag = 'input window, operand 0']
    #allocation3 [shape = 'u8[32768]{0}', space=vmem, size = 0x8000, scoped, tag = 'output window, operand 0']
    loop: start=0, step=1, limit=6
    $region2: #{deconv2d_forward.3} parent=1 // loop_pre_header
      _
    $region3: #{deconv2d_forward.3} parent=1 // loop_header
      %s9 = sphi 0, %s13
      %p10 = scmp.ge.s32.totalorder %s9, 6
      %s19 = sphi 0, %s21
      %s22 = sphi 0, %s19
      %s23 = sphi 0, %s22
      %s39 = sphi 0, %s23
      %s43 = sphi 0, %s43
      %s45 = sphi 0, %s43
      %s46 = sphi 0, %s45
      %s60 = sphi 0, %s46
      %s64 = sphi 0, %s64
      %s66 = sphi 0, %s64
      %s67 = sphi 0, %s66
      %s81 = sphi 0, %s67
      %s87 = sphi 0, %s89
      %s90 = sphi 0, %s87
      %s91 = sphi 0, %s90
      %s107 = sphi 0, %s91
    $region4: #{deconv2d_forward.3} parent=1 // loop_header_branch
      %12 = sbr.rel (%p10) target = $region8
    $region5: #{deconv2d_forward.3} parent=1 // loop_body
      %s14 = ssub.s32 %s9, 1
      %s15 = ssub.s32 %s9, 2
      %s16 = sadd.s32 %s9, 1
      %s17 = ssub.s32 %s9, %s16
      %p18 = scmp.eq.s32.totalorder %s17, 0
      %s20 = sadd.s32 %s19, 1
      %s21 = scalar_select %p18, %s19, %s20
      %p24 = pneg %p18
      %p25 = scmp.eq.s32.totalorder %s9, 3
      %p26 = por %p24, %p25
      %p27 = scmp.ne.s32.totalorder %s19, %s22
      %p28 = scmp.eq.s32.totalorder %s9, 0
      %p29 = por %p27, %p28
      %p30 = scmp.ne.s32.totalorder %s19, %s22
      %p31 = scmp.eq.s32.totalorder %s14, 3
      %p32 = por %p30, %p31
      %p33 = scmp.ne.s32.totalorder %s22, %s23
      %p34 = scmp.eq.s32.totalorder %s14, 0
      %p35 = por %p33, %p34
      %p36 = scmp.ne.s32.totalorder %s22, %s23
      %p37 = scmp.eq.s32.totalorder %s15, 3
      %p38 = por %p36, %p37
      %p40 = scmp.ne.s32.totalorder %s23, %s39
      %p41 = scmp.eq.s32.totalorder %s15, 0
      %p42 = por %p40, %p41
      %s44 = sadd.s32 %s43, 1
      %p47 = scmp.eq.s32.totalorder %s9, 3
      %p48 = scmp.ne.s32.totalorder %s43, %s45
      %p49 = scmp.eq.s32.totalorder %s9, 0
      %p50 = por %p48, %p49
      %p51 = scmp.ne.s32.totalorder %s43, %s45
      %p52 = scmp.eq.s32.totalorder %s14, 3
      %p53 = por %p51, %p52
      %p54 = scmp.ne.s32.totalorder %s45, %s46
      %p55 = scmp.eq.s32.totalorder %s14, 0
      %p56 = por %p54, %p55
      %p57 = scmp.ne.s32.totalorder %s45, %s46
      %p58 = scmp.eq.s32.totalorder %s15, 3
      %p59 = por %p57, %p58
      %p61 = scmp.ne.s32.totalorder %s46, %s60
      %p62 = scmp.eq.s32.totalorder %s15, 0
      %p63 = por %p61, %p62
      %s65 = sadd.s32 %s64, 1
      %p68 = scmp.eq.s32.totalorder %s9, 3
      %p69 = scmp.ne.s32.totalorder %s64, %s66
      %p70 = scmp.eq.s32.totalorder %s9, 0
      %p71 = por %p69, %p70
      %p72 = scmp.ne.s32.totalorder %s64, %s66
      %p73 = scmp.eq.s32.totalorder %s14, 3
      %p74 = por %p72, %p73
      %p75 = scmp.ne.s32.totalorder %s66, %s67
      %p76 = scmp.eq.s32.totalorder %s14, 0
      %p77 = por %p75, %p76
      %p78 = scmp.ne.s32.totalorder %s66, %s67
      %p79 = scmp.eq.s32.totalorder %s15, 3
      %p80 = por %p78, %p79
      %p82 = scmp.ne.s32.totalorder %s67, %s81
      %p83 = scmp.eq.s32.totalorder %s15, 0
      %p84 = por %p82, %p83
      %s85 = ssub.s32 %s9, %s16
      %p86 = scmp.eq.s32.totalorder %s85, 0
      %s88 = sadd.s32 %s87, 1
      %s89 = scalar_select %p86, %s87, %s88
      %p92 = pneg %p86
      %p93 = scmp.eq.s32.totalorder %s9, 3
      %p94 = por %p92, %p93
      %p95 = scmp.ne.s32.totalorder %s87, %s90
      %p96 = scmp.eq.s32.totalorder %s9, 0
      %p97 = por %p95, %p96
      %p98 = scmp.ne.s32.totalorder %s87, %s90
      %p99 = scmp.eq.s32.totalorder %s14, 3
      %p100 = por %p98, %p99
      %p101 = scmp.ne.s32.totalorder %s90, %s91
      %p102 = scmp.eq.s32.totalorder %s14, 0
      %p103 = por %p101, %p102
      %p104 = scmp.ne.s32.totalorder %s90, %s91
      %p105 = scmp.eq.s32.totalorder %s15, 3
      %p106 = por %p104, %p105
      %p108 = scmp.ne.s32.totalorder %s91, %s107
      %p109 = scmp.eq.s32.totalorder %s15, 0
      %p110 = por %p108, %p109
      %p111 = scmp.le.s32.totalorder 1, %s9
      %p112 = scmp.lt.s32.totalorder %s9, 5
      %p113 = pnand %p111, %p112
      %p114 = pneg %p113
      // Predicated region
      $region9: #{deconv2d_forward.3} parent=5 // pred_check
        _
      $region10: #{deconv2d_forward.3} parent=5 // pred_check_branch
        %116 = sbr.rel (%p113) target = $region12
      $region11: #{deconv2d_forward.3} parent=5 // pred_region
        %s117 = ssub.s32 %s9, 1
        // Predicated region
        $region13: #{deconv2d_forward.3} parent=11 // pred_check
          %p118 = pneg %p56
        $region14: #{deconv2d_forward.3} parent=11 // pred_check_branch
          %120 = sbr.rel (%p118) target = $region16
        $region15: #{deconv2d_forward.3} parent=11 // pred_region
          _
        $region16: #{deconv2d_forward.3} parent=11 // pred_fallthru
          _
        // Predicated region
        $region17: #{deconv2d_forward.3} parent=11 // pred_check
          %p121 = pneg %p77
        $region18: #{deconv2d_forward.3} parent=11 // pred_check_branch
          %123 = sbr.rel (%p121) target = $region20
        $region19: #{deconv2d_forward.3} parent=11 // pred_region
          _
        $region20: #{deconv2d_forward.3} parent=11 // pred_fallthru
          _
      $region12: #{deconv2d_forward.3} parent=5 // pred_fallthru
        _
      %p124 = scmp.lt.s32.totalorder %s9, 4
      // Predicated region
      $region21: #{deconv2d_forward.3} parent=5 // pred_check
        %p125 = pneg %p124
      $region22: #{deconv2d_forward.3} parent=5 // pred_check_branch
        %127 = sbr.rel (%p125) target = $region24
      $region23: #{deconv2d_forward.3} parent=5 // pred_region
        // Predicated region
        $region25: #{deconv2d_forward.3} parent=23 // pred_check
          %p128 = pneg %p29
        $region26: #{deconv2d_forward.3} parent=23 // pred_check_branch
          %130 = sbr.rel (%p128) target = $region28
        $region27: #{deconv2d_forward.3} parent=23 // pred_region
          %s131 = sand.u32 %s19, 1
          %s132 = sand.u32 %s19, 1
          %s133 = smul.addr %s132, 16
          %s134 = scalar_lea.vmem [#allocation2], %s133
          %s135 = smul.addr %s9, 4
          %s136 = scalar_lea.vmem %s0, %s135
          // Predicated region
          $region29: #{deconv2d_forward.3} parent=27 // pred_check
            _
          $region30: #{deconv2d_forward.3} parent=27 // pred_check_branch
            %138 = sbr.rel (0) target = $region32
          $region31: #{deconv2d_forward.3} parent=27 // pred_region
            // Predicated region
            $region33: #{deconv2d_forward.3} parent=31 // pred_check
              _
            $region34: #{deconv2d_forward.3} parent=31 // pred_check_branch
              %140 = sbr.rel target = $region36
            $region35: #{deconv2d_forward.3} parent=31 // pred_region
              // Predicated region
              $region48: #{deconv2d_forward.3} parent=35 // pred_check
                _
              $region49: #{deconv2d_forward.3} parent=35 // pred_check_branch
                %161 = sbr.rel (0) target = $region51
              $region50: #{deconv2d_forward.3} parent=35 // pred_region
                loop: start=0, step=1, limit=1
                $region52: #{deconv2d_forward.3} parent=50 // loop_pre_header
                  _
                $region53: #{deconv2d_forward.3} parent=50 // loop_header
                  %s163 = sphi 0, %s167
                  %p164 = scmp.ge.s32.totalorder %s163, 1
                  %s168 = sphi %s136, %s136
                  %s169 = sphi %s134, %s134
                $region54: #{deconv2d_forward.3} parent=50 // loop_header_branch
                  %166 = sbr.rel (%p164) target = $region58
                $region55: #{deconv2d_forward.3} parent=50 // loop_body
                  _
                $region56: #{deconv2d_forward.3} parent=50 // loop_footer
                  %s167 = sadd.s32 1, %s163
                $region57: #{deconv2d_forward.3} parent=50 // loop_footer_branch
                  %162 = sbr.rel target = $region53
                $region58: #{deconv2d_forward.3} parent=50 // loop_exit
                  _
                loop: start=0, step=1, limit=1
                $region59: #{deconv2d_forward.3} parent=50 // loop_pre_header
                  _
                $region60: #{deconv2d_forward.3} parent=50 // loop_header
                  %s172 = sphi 0, %s176
                  %p173 = scmp.ge.s32.totalorder %s172, 1
                  %s177 = sphi %s136, %s136
                  %s178 = sphi %s134, %s134
                $region61: #{deconv2d_forward.3} parent=50 // loop_header_branch
                  %175 = sbr.rel (%p173) target = $region65
                $region62: #{deconv2d_forward.3} parent=50 // loop_body
                  %v179 = vld [vmem:[%s177] sm:$0xf]
                  %180 = vst [vmem:[%s178] sm:$0xf] %v179
                  %v181 = vld [vmem:[%s177 + $0x10] sm:$0xf]
                  %182 = vst [vmem:[%s178 + $0x4] sm:$0xf] %v181
                  %v183 = vld [vmem:[%s177 + $0x20] sm:$0xf]
                  %184 = vst [vmem:[%s178 + $0x8] sm:$0xf] %v183
                  %v185 = vld [vmem:[%s177 + $0x30] sm:$0xf]
                  %186 = vst [vmem:[%s178 + $0xc] sm:$0xf] %v185
                $region63: #{deconv2d_forward.3} parent=50 // loop_footer
                  %s176 = sadd.s32 1, %s172
                $region64: #{deconv2d_forward.3} parent=50 // loop_footer_branch
                  %171 = sbr.rel target = $region60
                $region65: #{deconv2d_forward.3} parent=50 // loop_exit
                  _
              $region51: #{deconv2d_forward.3} parent=35 // pred_fallthru
                _
            $region36: #{deconv2d_forward.3} parent=31 // pred_fallthru
              _
            // Predicated region
            $region37: #{deconv2d_forward.3} parent=31 // pred_check
              _
            $region38: #{deconv2d_forward.3} parent=31 // pred_check_branch
              %142 = sbr.rel (0) target = $region40
            $region39: #{deconv2d_forward.3} parent=31 // pred_region
              loop: start=0, step=1, limit=1
              $region41: #{deconv2d_forward.3} parent=39 // loop_pre_header
                _
              $region42: #{deconv2d_forward.3} parent=39 // loop_header
                %s145 = sphi 0, %s149
                %p146 = scmp.ge.s32.totalorder %s145, 1
                %s150 = sphi %s136, %s136
                %s151 = sphi %s134, %s134
              $region43: #{deconv2d_forward.3} parent=39 // loop_header_branch
                %148 = sbr.rel (%p146) target = $region47
              $region44: #{deconv2d_forward.3} parent=39 // loop_body
                %v152 = vld [vmem:[%s150] sm:$0xf]
                %153 = vst [vmem:[%s151] sm:$0xf] %v152
                %v154 = vld [vmem:[%s150 + $0x10] sm:$0xf]
                %155 = vst [vmem:[%s151 + $0x4] sm:$0xf] %v154
                %v156 = vld [vmem:[%s150 + $0x20] sm:$0xf]
                %157 = vst [vmem:[%s151 + $0x8] sm:$0xf] %v156
                %v158 = vld [vmem:[%s150 + $0x30] sm:$0xf]
                %159 = vst [vmem:[%s151 + $0xc] sm:$0xf] %v158
              $region45: #{deconv2d_forward.3} parent=39 // loop_footer
                %s149 = sadd.s32 1, %s145
              $region46: #{deconv2d_forward.3} parent=39 // loop_footer_branch
                %144 = sbr.rel target = $region42
              $region47: #{deconv2d_forward.3} parent=39 // loop_exit
                _
            $region40: #{deconv2d_forward.3} parent=31 // pred_fallthru
              _
          $region32: #{deconv2d_forward.3} parent=27 // pred_fallthru
            _
          %187 = vnop
        $region28: #{deconv2d_forward.3} parent=23 // pred_fallthru
          _
      $region24: #{deconv2d_forward.3} parent=5 // pred_fallthru
        _
      %p188 = scmp.le.s32.totalorder 1, %s9
      %p189 = scmp.lt.s32.totalorder %s9, 5
      %p190 = pnand %p188, %p189
      %p191 = pneg %p190
      // Predicated region
      $region66: #{deconv2d_forward.3} parent=5 // pred_check
        _
      $region67: #{deconv2d_forward.3} parent=5 // pred_check_branch
        %193 = sbr.rel (%p190) target = $region69
      $region68: #{deconv2d_forward.3} parent=5 // pred_region
        %s194 = ssub.s32 %s9, 1
        %s195 = sand.u32 %s22, 1
        %s196 = sand.u32 %s22, 1
        %s197 = smul.addr %s196, 16
        %s198 = scalar_lea.vmem [#allocation2], %s197
        // Predicated region
        $region70: #{deconv2d_forward.3} parent=68 // pred_check
          %p199 = pneg %p35
        $region71: #{deconv2d_forward.3} parent=68 // pred_check_branch
          %201 = sbr.rel (%p199) target = $region73
        $region72: #{deconv2d_forward.3} parent=68 // pred_region
          _
        $region73: #{deconv2d_forward.3} parent=68 // pred_fallthru
          _
        %s202 = sand.u32 %s22, 1
        %s203 = sand.u32 %s22, 1
        %s204 = smul.addr %s203, 16
        %s205 = scalar_lea.vmem [#allocation2], %s204
        %p206 = pneg %p35
        %p207 = pneg %p32
        %p208 = pneg %p56
        %p209 = pneg %p53
        %p210 = pneg %p77
        %p211 = pneg %p74
        %p212 = pneg %p103
        %p213 = pneg %p100
        %s214 = sand.u32 %s90, 1
        %s215 = sand.u32 %s90, 1
        %s216 = smul.addr %s215, 32
        %s217 = scalar_lea.vmem [#allocation3], %s216
        %v218 = vld [vmem:[%s198] sm:$0xf]
        %v219 = vld [vmem:[%s198 + $0x4] sm:$0xf]
        %v220 = vld [vmem:[%s198 + $0x8] sm:$0xf]
        %v221 = vld [vmem:[%s198 + $0xc] sm:$0xf]
        %v222 = vunpack.c.l.bf16 %v218
        %v223 = vunpack.c.l.bf16 %v219
        %v224 = vunpack.c.l.bf16 %v220
        %v225 = vunpack.c.l.bf16 %v221
        %v226 = vld [vmem:[%s1] sm:$0xff]
        %v227 = vld [vmem:[%s1 + $0x8] sm:$0xff]
        %v228 = vld [vmem:[%s1 + $0x10] sm:$0xff]
        %v229 = vld [vmem:[%s1 + $0x18] sm:$0xff]
        %231 = vset.pattern.permute.xlu0 0
        %232 = vperm.xlu0 %231, %v226
        %v233 = vpop.permute.xlu0 %232
        %236 = vset.pattern.permute.xlu0 0
        %237 = vperm.xlu0 %236, %v227
        %v238 = vpop.permute.xlu0 %237
        %241 = vset.pattern.permute.xlu0 0
        %242 = vperm.xlu0 %241, %v228
        %v243 = vpop.permute.xlu0 %242
        %246 = vset.pattern.permute.xlu0 0
        %247 = vperm.xlu0 %246, %v229
        %v248 = vpop.permute.xlu0 %247
        %v250 = vmul.f32 %v222, %v233
        %v251 = vmul.f32 %v223, %v238
        %v252 = vmul.f32 %v224, %v243
        %v253 = vmul.f32 %v225, %v248
        %v254 = vld [vmem:[%s2] sm:$0xff]
        %v255 = vld [vmem:[%s2 + $0x8] sm:$0xff]
        %v256 = vld [vmem:[%s2 + $0x10] sm:$0xff]
        %v257 = vld [vmem:[%s2 + $0x18] sm:$0xff]
        %259 = vset.pattern.permute.xlu0 0
        %260 = vperm.xlu0 %259, %v254
        %v261 = vpop.permute.xlu0 %260
        %264 = vset.pattern.permute.xlu0 0
        %265 = vperm.xlu0 %264, %v255
        %v266 = vpop.permute.xlu0 %265
        %269 = vset.pattern.permute.xlu0 0
        %270 = vperm.xlu0 %269, %v256
        %v271 = vpop.permute.xlu0 %270
        %274 = vset.pattern.permute.xlu0 0
        %275 = vperm.xlu0 %274, %v257
        %v276 = vpop.permute.xlu0 %275
        %v278 = vadd.f32 %v250, %v261
        %v279 = vadd.f32 %v251, %v266
        %v280 = vadd.f32 %v252, %v271
        %v281 = vadd.f32 %v253, %v276
        %v282 = vmax.f32 %v278, 0.0
        %v283 = vmax.f32 %v279, 0.0
        %v284 = vmax.f32 %v280, 0.0
        %v285 = vmax.f32 %v281, 0.0
        %286 = vst [vmem:[%s217] sm:$0xff] %v282
        %287 = vst [vmem:[%s217 + $0x8] sm:$0xff] %v283
        %288 = vst [vmem:[%s217 + $0x10] sm:$0xff] %v284
        %289 = vst [vmem:[%s217 + $0x18] sm:$0xff] %v285
        %s290 = sand.u32 %s90, 1
        %s291 = sand.u32 %s90, 1
        %s292 = smul.addr %s291, 32
        %s293 = scalar_lea.vmem [#allocation3], %s292
        // Predicated region
        $region74: #{deconv2d_forward.3} parent=68 // pred_check
          %p294 = pneg %p100
        $region75: #{deconv2d_forward.3} parent=68 // pred_check_branch
          %296 = sbr.rel (%p294) target = $region77
        $region76: #{deconv2d_forward.3} parent=68 // pred_region
          %s297 = smul.addr %s14, 8
          %s298 = scalar_lea.vmem %s3, %s297
          // Predicated region
          $region78: #{deconv2d_forward.3} parent=76 // pred_check
            _
          $region79: #{deconv2d_forward.3} parent=76 // pred_check_branch
            %300 = sbr.rel (0) target = $region81
          $region80: #{deconv2d_forward.3} parent=76 // pred_region
            // Predicated region
            $region82: #{deconv2d_forward.3} parent=80 // pred_check
              _
            $region83: #{deconv2d_forward.3} parent=80 // pred_check_branch
              %302 = sbr.rel (0) target = $region85
            $region84: #{deconv2d_forward.3} parent=80 // pred_region
              // Predicated region
              $region97: #{deconv2d_forward.3} parent=84 // pred_check
                _
              $region98: #{deconv2d_forward.3} parent=84 // pred_check_branch
                %323 = sbr.rel (0) target = $region100
              $region99: #{deconv2d_forward.3} parent=84 // pred_region
                loop: start=0, step=1, limit=1
                $region101: #{deconv2d_forward.3} parent=99 // loop_pre_header
                  _
                $region102: #{deconv2d_forward.3} parent=99 // loop_header
                  %s325 = sphi 0, %s329
                  %p326 = scmp.ge.s32.totalorder %s325, 1
                  %s330 = sphi %s293, %s293
                  %s331 = sphi %s298, %s298
                $region103: #{deconv2d_forward.3} parent=99 // loop_header_branch
                  %328 = sbr.rel (%p326) target = $region107
                $region104: #{deconv2d_forward.3} parent=99 // loop_body
                  %v332 = vld [vmem:[%s330] sm:$0xff]
                  %333 = vst [vmem:[%s331] sm:$0xff] %v332
                  %v334 = vld [vmem:[%s330 + $0x8] sm:$0xff]
                  %335 = vst [vmem:[%s331 + $0x20] sm:$0xff] %v334
                  %v336 = vld [vmem:[%s330 + $0x10] sm:$0xff]
                  %337 = vst [vmem:[%s331 + $0x40] sm:$0xff] %v336
                  %v338 = vld [vmem:[%s330 + $0x18] sm:$0xff]
                  %339 = vst [vmem:[%s331 + $0x60] sm:$0xff] %v338
                $region105: #{deconv2d_forward.3} parent=99 // loop_footer
                  %s329 = sadd.s32 1, %s325
                $region106: #{deconv2d_forward.3} parent=99 // loop_footer_branch
                  %324 = sbr.rel target = $region102
                $region107: #{deconv2d_forward.3} parent=99 // loop_exit
                  _
              $region100: #{deconv2d_forward.3} parent=84 // pred_fallthru
                _
              // Predicated region
              $region108: #{deconv2d_forward.3} parent=84 // pred_check
                _
              $region109: #{deconv2d_forward.3} parent=84 // pred_check_branch
                %341 = sbr.rel target = $region111
              $region110: #{deconv2d_forward.3} parent=84 // pred_region
                _
              $region111: #{deconv2d_forward.3} parent=84 // pred_fallthru
                _
            $region85: #{deconv2d_forward.3} parent=80 // pred_fallthru
              _
            // Predicated region
            $region86: #{deconv2d_forward.3} parent=80 // pred_check
              _
            $region87: #{deconv2d_forward.3} parent=80 // pred_check_branch
              %304 = sbr.rel target = $region89
            $region88: #{deconv2d_forward.3} parent=80 // pred_region
              loop: start=0, step=1, limit=1
              $region90: #{deconv2d_forward.3} parent=88 // loop_pre_header
                _
              $region91: #{deconv2d_forward.3} parent=88 // loop_header
                %s307 = sphi 0, %s311
                %p308 = scmp.ge.s32.totalorder %s307, 1
                %s312 = sphi %s293, %s293
                %s313 = sphi %s298, %s298
              $region92: #{deconv2d_forward.3} parent=88 // loop_header_branch
                %310 = sbr.rel (%p308) target = $region96
              $region93: #{deconv2d_forward.3} parent=88 // loop_body
                %v314 = vld [vmem:[%s312] sm:$0xff]
                %315 = vst [vmem:[%s313] sm:$0xff] %v314
                %v316 = vld [vmem:[%s312 + $0x8] sm:$0xff]
                %317 = vst [vmem:[%s313 + $0x20] sm:$0xff] %v316
                %v318 = vld [vmem:[%s312 + $0x10] sm:$0xff]
                %319 = vst [vmem:[%s313 + $0x40] sm:$0xff] %v318
                %v320 = vld [vmem:[%s312 + $0x18] sm:$0xff]
                %321 = vst [vmem:[%s313 + $0x60] sm:$0xff] %v320
              $region94: #{deconv2d_forward.3} parent=88 // loop_footer
                %s311 = sadd.s32 1, %s307
              $region95: #{deconv2d_forward.3} parent=88 // loop_footer_branch
                %306 = sbr.rel target = $region91
              $region96: #{deconv2d_forward.3} parent=88 // loop_exit
                _
            $region89: #{deconv2d_forward.3} parent=80 // pred_fallthru
              _
          $region81: #{deconv2d_forward.3} parent=76 // pred_fallthru
            _
          %342 = vnop
        $region77: #{deconv2d_forward.3} parent=68 // pred_fallthru
          _
      $region69: #{deconv2d_forward.3} parent=5 // pred_fallthru
        _
      %p343 = scmp.le.s32.totalorder 2, %s9
      // Predicated region
      $region112: #{deconv2d_forward.3} parent=5 // pred_check
        %p344 = pneg %p343
      $region113: #{deconv2d_forward.3} parent=5 // pred_check_branch
        %346 = sbr.rel (%p344) target = $region115
      $region114: #{deconv2d_forward.3} parent=5 // pred_region
        %s347 = ssub.s32 %s9, 2
        // Predicated region
        $region116: #{deconv2d_forward.3} parent=114 // pred_check
          %p348 = pneg %p106
        $region117: #{deconv2d_forward.3} parent=114 // pred_check_branch
          %350 = sbr.rel (%p348) target = $region119
        $region118: #{deconv2d_forward.3} parent=114 // pred_region
          %s351 = sand.u32 %s91, 1
          %s352 = sand.u32 %s91, 1
          %s353 = smul.addr %s352, 32
          %s354 = scalar_lea.vmem [#allocation3], %s353
        $region119: #{deconv2d_forward.3} parent=114 // pred_fallthru
          _
      $region115: #{deconv2d_forward.3} parent=5 // pred_fallthru
        _
    $region6: #{deconv2d_forward.3} parent=1 // loop_footer
      %s13 = sadd.s32 1, %s9
    $region7: #{deconv2d_forward.3} parent=1 // loop_footer_branch
      %8 = sbr.rel target = $region3
    $region8: #{deconv2d_forward.3} parent=1 // loop_exit
      _

</llo_original>
